<compile_context>
chip_gen: v5e
topology: v5e:2x2
jax: 0.10.0
libtpu: 0.0.40
codegen_flags: <defaults>
</compile_context>

<pallas_src>
import functools

import jax
import jax.numpy as jnp
from jax.experimental import pallas as pl
from jax.experimental.pallas import tpu as pltpu

EPS = 0.01       # module eps (normalize)
BN_EPS = 1e-5    # torch.nn.BatchNorm1d default eps


def _round_up(n, m):
    return ((n + m - 1) // m) * m


def _cdiv(a, b):
    return -(-a // b)


# -----------------------------------------------------------------------------
# Kernel: pure matmul + bias + ReLU + clip. The input normalization and the
# eval-mode BatchNorm are affine and were folded into the weights/biases in
# prepare_params(); Dropout is identity in eval mode.
# -----------------------------------------------------------------------------
def _symptom_kernel(x_ref, w1_ref, b1_ref, w2_ref, b2_ref, wf_ref, bf_ref, o_ref,
                    *, max_rating):
    # x arrives as bf16 (halved DMA bytes); layer 1 runs with the f32 folded
    # weight for precision, everything accumulates in f32 on the MXU.
    x = x_ref[...].astype(jnp.float32)
    h = jnp.dot(x, w1_ref[...], preferred_element_type=jnp.float32) + b1_ref[...]
    h = jnp.maximum(h, 0.0).astype(w2_ref.dtype)
    h = jnp.dot(h, w2_ref[...], preferred_element_type=jnp.float32) + b2_ref[...]
    h = jnp.maximum(h, 0.0).astype(wf_ref.dtype)
    y = jnp.dot(h, wf_ref[...], preferred_element_type=jnp.float32) + bf_ref[...]
    o_ref[...] = jnp.clip(y, 0.0, max_rating).astype(o_ref.dtype)


# -----------------------------------------------------------------------------
# One-time (model-load) parameter preparation: folding, padding, casting.
# -----------------------------------------------------------------------------
def prepare_params(params, *, eps=EPS, bn_eps=BN_EPS, use_bf16=True):
    (input_mean, input_std, w1, b1, w2, b2, wf, bf,
     bn_gamma, bn_beta, bn_mean, bn_var) = params

    input_size, h1 = w1.shape
    h2 = w2.shape[1]
    n_out = wf.shape[1]

    # Fold normalization into layer 1: xn = x*scale + shift.
    scale = 1.0 / (input_std + eps)                              # (1, in)
    shift = (eps - input_mean) * scale                           # (1, in)
    w1f = w1 * scale.reshape(input_size, 1)
    b1f = b1 + shift @ w1

    # Fold eval-mode BatchNorm1d into the final layer: bn(h) = h*s + t.
    s = bn_gamma / jnp.sqrt(bn_var + bn_eps)
    t = bn_beta - bn_mean * s
    wff = wf * s.reshape(h2, 1)
    bff = bf + t.reshape(1, h2) @ wf

    # Zero-pad feature dims to multiples of 128 (lane-dense tiles / unmasked
    # stores; padded columns stay zero through bias/ReLU/matmul).
    h1p, h2p, outp = _round_up(h1, 128), _round_up(h2, 128), _round_up(n_out, 128)
    w1f = jnp.pad(w1f, ((0, 0), (0, h1p - h1)))
    b1f = jnp.pad(b1f, ((0, 0), (0, h1p - h1)))
    w2f = jnp.pad(w2, ((0, h1p - h1), (0, h2p - h2)))
    b2f = jnp.pad(b2, ((0, 0), (0, h2p - h2)))
    wff = jnp.pad(wff, ((0, h2p - h2), (0, outp - n_out)))
    bff = jnp.pad(bff, ((0, 0), (0, outp - n_out)))

    mxu_dtype = jnp.bfloat16 if use_bf16 else jnp.float32
    w2f = w2f.astype(mxu_dtype)
    wff = wff.astype(mxu_dtype)
    # w1f (carries the folded normalization scale) and all biases stay f32.

    return dict(w1=w1f, b1=b1f, w2=w2f, b2=b2f, wf=wff, bf=bff,
                n_out=n_out, use_bf16=use_bf16)


# -----------------------------------------------------------------------------
# Fused eval-mode forward. `prepared` comes from prepare_params (model-load time).
# -----------------------------------------------------------------------------
def symptom_predictor_forward(x, prepared, *, max_rating=10.0, tile_batch=512):
    w1, b1, w2, b2, wf, bf = (prepared["w1"], prepared["b1"], prepared["w2"],
                              prepared["b2"], prepared["wf"], prepared["bf"])
    n_out = prepared["n_out"]
    use_bf16 = prepared["use_bf16"]

    batch, input_size = x.shape
    h1p, h2p, outp = w1.shape[1], w2.shape[1], wf.shape[1]

    io_dtype = jnp.bfloat16 if use_bf16 else jnp.float32
    io_item = 2 if use_bf16 else 4
    sub = 16 if use_bf16 else 8      # min sublane group (bf16 packs 2 rows/sublane)

    # Batch tiling: tiles <= tile_batch, padding < one sublane group, and >= 2
    # grid steps whenever the batch can be split (v7x has 2 TensorCores;
    # "parallel" shards grid steps across them).
    n_tiles = _cdiv(batch, tile_batch)
    if batch > sub:
        n_tiles = max(n_tiles, 2)
    tb = _round_up(_cdiv(batch, n_tiles), sub)
    n_tiles = _cdiv(batch, tb)
    batch_p = n_tiles * tb

    xp = jnp.pad(x.astype(io_dtype), ((0, batch_p - batch), (0, 0)))

    def resident(shape):
        # Fetched once (constant block index); single-buffered to halve the
        # resident-weight VMEM footprint.
        return pl.BlockSpec(shape, lambda i: (0, 0), pipeline_mode=pl.Buffered(1))

    def _nbytes(a):
        return a.size * a.dtype.itemsize

    flops = 2 * batch_p * (input_size * h1p + h1p * h2p + h2p * outp)
    w_bytes = (_nbytes(w1) + _nbytes(b1) + _nbytes(w2) + _nbytes(b2)
               + _nbytes(wf) + _nbytes(bf))
    bytes_accessed = _nbytes(xp) + w_bytes + batch_p * outp * io_item

    # Explicit VMEM budget: single-buffered weights + double-buffered x/out
    # blocks + f32 intermediates; capped at 64 MiB (v7x physical VMEM).
    vmem_budget = (w_bytes
                   + 2 * tb * (input_size + outp) * io_item
                   + tb * (input_size + h1p + h2p + outp) * 4)
    vmem_limit = int(min(max(2 * vmem_budget, 32 << 20), 64 << 20))

    out = pl.pallas_call(
        functools.partial(_symptom_kernel, max_rating=float(max_rating)),
        out_shape=jax.ShapeDtypeStruct((batch_p, outp), io_dtype),
        grid=(n_tiles,),
        in_specs=[
            pl.BlockSpec((tb, input_size), lambda i: (i, 0)),   # x: pipelined over batch
            resident((input_size, h1p)),                        # weights/biases resident
            resident((1, h1p)),
            resident((h1p, h2p)),
            resident((1, h2p)),
            resident((h2p, outp)),
            resident((1, outp)),
        ],
        out_specs=pl.BlockSpec((tb, outp), lambda i: (i, 0)),
        compiler_params=pltpu.CompilerParams(
            dimension_semantics=("parallel",),
            vmem_limit_bytes=vmem_limit),
        cost_estimate=pl.CostEstimate(flops=flops, transcendentals=0,
                                      bytes_accessed=bytes_accessed),
    )(xp, w1, b1, w2, b2, wf, bf)

    # A consumer that tolerates padding can read the (batch_p, outp) buffer
    # directly and skip this extra slice pass; kept here to match the module.
    return out[:batch, :n_out]


def init_params(key, input_size, hidden_layers, output_size):
    """Deterministic synthetic parameters matching the PyTorch module
    (2 hidden layers); weights stored [in_features, out_features]."""
    h1, h2 = hidden_layers
    ks = jax.random.split(key, 12)
    w1 = jax.random.normal(ks[0], (input_size, h1), jnp.float32) * 0.05
    b1 = jax.random.normal(ks[1], (1, h1), jnp.float32) * 0.05
    w2 = jax.random.normal(ks[2], (h1, h2), jnp.float32) * 0.05
    b2 = jax.random.normal(ks[3], (1, h2), jnp.float32) * 0.05
    wf = jax.random.normal(ks[4], (h2, output_size), jnp.float32) * 0.05
    bf = jax.random.normal(ks[5], (1, output_size), jnp.float32) * 0.05
    # Registered buffers default to mean=0, std=1; use non-trivial values here
    # (as if fit_normalizer had run) so the normalization fold is exercised.
    input_mean = jax.random.normal(ks[6], (1, input_size), jnp.float32) * 0.1
    input_std = 1.0 + jnp.abs(jax.random.normal(ks[7], (1, input_size), jnp.float32)) * 0.2
    # BatchNorm1d(h2) eval-mode affine params / running stats (non-trivial).
    bn_gamma = 1.0 + jax.random.normal(ks[8], (h2,), jnp.float32) * 0.1
    bn_beta = jax.random.normal(ks[9], (h2,), jnp.float32) * 0.1
    bn_mean = jax.random.normal(ks[10], (h2,), jnp.float32) * 0.05
    bn_var = 1.0 + jnp.abs(jax.random.normal(ks[11], (h2,), jnp.float32)) * 0.1
    return (input_mean, input_std, w1, b1, w2, b2, wf, bf,
            bn_gamma, bn_beta, bn_mean, bn_var)


def reference_forward(x, params, *, max_rating=10.0, eps=EPS, bn_eps=BN_EPS):
    """Pure-JAX mirror of SymptomPredictor.forward in eval mode."""
    (input_mean, input_std, w1, b1, w2, b2, wf, bf,
     bn_gamma, bn_beta, bn_mean, bn_var) = params
    xn = (x - input_mean + eps) / (input_std + eps)
    h = jnp.maximum(xn @ w1 + b1, 0.0)
    h = jnp.maximum(h @ w2 + b2, 0.0)
    h = (h - bn_mean) / jnp.sqrt(bn_var + bn_eps) * bn_gamma + bn_beta
    # dropout is identity in eval
    y = h @ wf + bf
    return jnp.clip(y, 0.0, max_rating)


if __name__ == "__main__":
    # Small shapes consistent with the module (defaults hidden_layers=[1000,100]
    # scaled down; intentionally unaligned to exercise the 128-padding path).
    batch = 16
    input_size = 32
    hidden_layers = [96, 48]
    output_size = 7
    max_rating = 10.0

    key = jax.random.PRNGKey(0)
    kx, kp = jax.random.split(key)
    x = jax.random.normal(kx, (batch, input_size), jnp.float32)
    params = init_params(kp, input_size, hidden_layers, output_size)

    ref = reference_forward(x, params, max_rating=max_rating)

    # Default path: bf16 x / w2 / wf / output, f32 w1 + accumulate + epilogue.
    prep_bf16 = prepare_params(params, use_bf16=True)
    out_bf16 = jax.block_until_ready(
        symptom_predictor_forward(x, prep_bf16, max_rating=max_rating))
    assert out_bf16.shape == (batch, output_size)
    assert jnp.allclose(out_bf16.astype(jnp.float32), ref, atol=5e-2, rtol=5e-2), \
        "bf16 kernel mismatch"

    # Full-f32 path (tight tolerance; folding only reassociates affine math).
    prep_f32 = prepare_params(params, use_bf16=False)
    out_f32 = jax.block_until_ready(
        symptom_predictor_forward(x, prep_f32, max_rating=max_rating))
    assert out_f32.shape == (batch, output_size)
    assert jnp.allclose(out_f32, ref, atol=1e-4, rtol=1e-4), "f32 kernel mismatch"

    # TODO(synk): training-mode Dropout / BatchNorm batch statistics and
    # get_embedding() are not implemented (inference-only kernel).
    print("KERNEL_OK")
</pallas_src>

<mosaic_0001>
module attributes {stable_mosaic.version = 11 : i64} {
  func.func @_symptom_kernel(%arg0: i32, %arg1: memref<16x32xbf16, #tpu.memory_space<vmem>>, %arg2: memref<32x128xf32, #tpu.memory_space<vmem>>, %arg3: memref<1x128xf32, #tpu.memory_space<vmem>>, %arg4: memref<128x128xbf16, #tpu.memory_space<vmem>>, %arg5: memref<1x128xf32, #tpu.memory_space<vmem>>, %arg6: memref<128x128xbf16, #tpu.memory_space<vmem>>, %arg7: memref<1x128xf32, #tpu.memory_space<vmem>>, %arg8: memref<16x128xbf16, #tpu.memory_space<vmem>>) attributes {dimension_semantics = [#tpu.dimension_semantics<parallel>], iteration_bounds = array<i64: 1>, scalar_prefetch = 0 : i64, scratch_operands = 0 : i64, tpu.core_type = #tpu.core_type<tc>, window_params = [{transform_indices = @transform_0, window_bounds = array<i64: 16, 32>}, {pipeline_mode = #tpu.pipeline_mode<synchronous>, transform_indices = @transform_1, window_bounds = array<i64: 32, 128>}, {pipeline_mode = #tpu.pipeline_mode<synchronous>, transform_indices = @transform_2, window_bounds = array<i64: 1, 128>}, {pipeline_mode = #tpu.pipeline_mode<synchronous>, transform_indices = @transform_3, window_bounds = array<i64: 128, 128>}, {pipeline_mode = #tpu.pipeline_mode<synchronous>, transform_indices = @transform_4, window_bounds = array<i64: 1, 128>}, {pipeline_mode = #tpu.pipeline_mode<synchronous>, transform_indices = @transform_5, window_bounds = array<i64: 128, 128>}, {pipeline_mode = #tpu.pipeline_mode<synchronous>, transform_indices = @transform_6, window_bounds = array<i64: 1, 128>}, {transform_indices = @transform_7, window_bounds = array<i64: 16, 128>}]} {
    %c0 = arith.constant 0 : index
    %c0_0 = arith.constant 0 : index
    %0 = vector.load %arg1[%c0, %c0_0] : memref<16x32xbf16, #tpu.memory_space<vmem>>, vector<16x32xbf16>
    %1 = arith.extf %0 : vector<16x32xbf16> to vector<16x32xf32>
    %c0_1 = arith.constant 0 : index
    %c0_2 = arith.constant 0 : index
    %2 = vector.load %arg2[%c0_1, %c0_2] : memref<32x128xf32, #tpu.memory_space<vmem>>, vector<32x128xf32>
    %cst = arith.constant dense<0.000000e+00> : vector<16x128xf32>
    %3 = tpu.matmul %1, %2, %cst {dimension_numbers = #tpu.dot_dimension_numbers<[1], [0], [0], [1], [0, 0, 1, 1], [], []>} : vector<16x32xf32>, vector<32x128xf32>, vector<16x128xf32> -> vector<16x128xf32>
    %c0_3 = arith.constant 0 : index
    %c0_4 = arith.constant 0 : index
    %4 = vector.load %arg3[%c0_3, %c0_4] : memref<1x128xf32, #tpu.memory_space<vmem>>, vector<1x128xf32>
    %5 = vector.broadcast %4 : vector<1x128xf32> to vector<16x128xf32>
    %6 = arith.addf %3, %5 : vector<16x128xf32>
    %cst_5 = arith.constant 0.000000e+00 : f32
    %7 = vector.broadcast %cst_5 : f32 to vector<16x128xf32>
    %8 = arith.maximumf %6, %7 : vector<16x128xf32>
    %9 = arith.truncf %8 : vector<16x128xf32> to vector<16x128xbf16>
    %c0_6 = arith.constant 0 : index
    %c0_7 = arith.constant 0 : index
    %10 = vector.load %arg4[%c0_6, %c0_7] : memref<128x128xbf16, #tpu.memory_space<vmem>>, vector<128x128xbf16>
    %cst_8 = arith.constant dense<0.000000e+00> : vector<16x128xf32>
    %11 = tpu.matmul %9, %10, %cst_8 {dimension_numbers = #tpu.dot_dimension_numbers<[1], [0], [0], [1], [0, 0, 1, 1], [], []>} : vector<16x128xbf16>, vector<128x128xbf16>, vector<16x128xf32> -> vector<16x128xf32>
    %c0_9 = arith.constant 0 : index
    %c0_10 = arith.constant 0 : index
    %12 = vector.load %arg5[%c0_9, %c0_10] : memref<1x128xf32, #tpu.memory_space<vmem>>, vector<1x128xf32>
    %13 = vector.broadcast %12 : vector<1x128xf32> to vector<16x128xf32>
    %14 = arith.addf %11, %13 : vector<16x128xf32>
    %cst_11 = arith.constant 0.000000e+00 : f32
    %15 = vector.broadcast %cst_11 : f32 to vector<16x128xf32>
    %16 = arith.maximumf %14, %15 : vector<16x128xf32>
    %17 = arith.truncf %16 : vector<16x128xf32> to vector<16x128xbf16>
    %c0_12 = arith.constant 0 : index
    %c0_13 = arith.constant 0 : index
    %18 = vector.load %arg6[%c0_12, %c0_13] : memref<128x128xbf16, #tpu.memory_space<vmem>>, vector<128x128xbf16>
    %cst_14 = arith.constant dense<0.000000e+00> : vector<16x128xf32>
    %19 = tpu.matmul %17, %18, %cst_14 {dimension_numbers = #tpu.dot_dimension_numbers<[1], [0], [0], [1], [0, 0, 1, 1], [], []>} : vector<16x128xbf16>, vector<128x128xbf16>, vector<16x128xf32> -> vector<16x128xf32>
    %c0_15 = arith.constant 0 : index
    %c0_16 = arith.constant 0 : index
    %20 = vector.load %arg7[%c0_15, %c0_16] : memref<1x128xf32, #tpu.memory_space<vmem>>, vector<1x128xf32>
    %21 = vector.broadcast %20 : vector<1x128xf32> to vector<16x128xf32>
    %22 = arith.addf %19, %21 : vector<16x128xf32>
    %cst_17 = arith.constant 0.000000e+00 : f32
    %cst_18 = arith.constant 1.000000e+01 : f32
    %23 = vector.broadcast %cst_17 : f32 to vector<16x128xf32>
    %24 = arith.maximumf %23, %22 : vector<16x128xf32>
    %25 = vector.broadcast %cst_18 : f32 to vector<16x128xf32>
    %26 = arith.minimumf %25, %24 : vector<16x128xf32>
    %27 = arith.truncf %26 : vector<16x128xf32> to vector<16x128xbf16>
    %c0_19 = arith.constant 0 : index
    %c0_20 = arith.constant 0 : index
    %28 = vector.load %arg8[%c0_19, %c0_20] : memref<16x128xbf16, #tpu.memory_space<vmem>>, vector<16x128xbf16>
    tpu.vector_store %arg8[%c0_19, %c0_20], %27 {strides = array<i32>} : memref<16x128xbf16, #tpu.memory_space<vmem>>, vector<16x128xbf16>,
    return
  }
  func.func @transform_0(%arg0: i32) -> (i32, i32) {
    %c0_i32 = arith.constant 0 : i32
    %c0_i32_0 = arith.constant 0 : i32
    return %arg0, %c0_i32 : i32, i32
  }
  func.func @transform_1(%arg0: i32) -> (i32, i32) {
    %c0_i32 = arith.constant 0 : i32
    %c0_i32_0 = arith.constant 0 : i32
    %c0_i32_1 = arith.constant 0 : i32
    return %c0_i32, %c0_i32_0 : i32, i32
  }
  func.func @transform_2(%arg0: i32) -> (i32, i32) {
    %c0_i32 = arith.constant 0 : i32
    %c0_i32_0 = arith.constant 0 : i32
    %c0_i32_1 = arith.constant 0 : i32
    return %c0_i32, %c0_i32_0 : i32, i32
  }
  func.func @transform_3(%arg0: i32) -> (i32, i32) {
    %c0_i32 = arith.constant 0 : i32
    %c0_i32_0 = arith.constant 0 : i32
    %c0_i32_1 = arith.constant 0 : i32
    return %c0_i32, %c0_i32_0 : i32, i32
  }
  func.func @transform_4(%arg0: i32) -> (i32, i32) {
    %c0_i32 = arith.constant 0 : i32
    %c0_i32_0 = arith.constant 0 : i32
    %c0_i32_1 = arith.constant 0 : i32
    return %c0_i32, %c0_i32_0 : i32, i32
  }
  func.func @transform_5(%arg0: i32) -> (i32, i32) {
    %c0_i32 = arith.constant 0 : i32
    %c0_i32_0 = arith.constant 0 : i32
    %c0_i32_1 = arith.constant 0 : i32
    return %c0_i32, %c0_i32_0 : i32, i32
  }
  func.func @transform_6(%arg0: i32) -> (i32, i32) {
    %c0_i32 = arith.constant 0 : i32
    %c0_i32_0 = arith.constant 0 : i32
    %c0_i32_1 = arith.constant 0 : i32
    return %c0_i32, %c0_i32_0 : i32, i32
  }
  func.func @transform_7(%arg0: i32) -> (i32, i32) {
    %c0_i32 = arith.constant 0 : i32
    %c0_i32_0 = arith.constant 0 : i32
    return %arg0, %c0_i32 : i32, i32
  }
}

</mosaic_0001>

<llo_original>
// kernel: tpu_custom_call.1
$region0: #{tpu_custom_call.1}
  #allocation0 [shape = 'u32[]', space=smem, size = 0x4, offset = 0x4, fixed_abs, tag = 'smem constant byte address 0x4 - core index']
  #allocation1 [shape = 'u32[72,128]{1,0:T(1,128)}', space=vmem, size = 0x9000, scoped, tag = 'internal scratch']
  %s0 = inlined_call_operand.hbm [shape: bf16[16,32], index: 0, kind: input, shape index: {}]
  %s1 = inlined_call_operand.hbm [shape: f32[32,128], index: 1, kind: input, shape index: {}]
  %s2 = inlined_call_operand.vmem [shape: f32[1,128], index: 2, kind: input, shape index: {}]
  %s3 = inlined_call_operand.hbm [shape: bf16[128,128], index: 3, kind: input, shape index: {}]
  %s4 = inlined_call_operand.vmem [shape: f32[1,128], index: 4, kind: input, shape index: {}]
  %s5 = inlined_call_operand.hbm [shape: bf16[128,128], index: 5, kind: input, shape index: {}]
  %s6 = inlined_call_operand.vmem [shape: f32[1,128], index: 6, kind: input, shape index: {}]
  %s7 = inlined_call_operand.hbm [shape: bf16[16,128], index: 7, kind: output, shape index: {}]
  %s8 = sld [smem:[#allocation0]]
  $region54: #{tpu_custom_call.1} parent=0
    _
  %s10 = ssub.s32 1, %s8
  %s11 = scalar_select 0, %s10, %s8
  $region1: #{tpu_custom_call.1} parent=0
    #allocation2 [shape = 'u8[4096]{0}', space=vmem, size = 0x1000, scoped, tag = 'input window, operand 0, single buffered']
    #allocation3 [shape = 's32[1]{0}', space=sflag, size = 0x4, scoped, tag = 'scoped memory for tpu_custom_call.1']
    #allocation4 [shape = 's32[1]{0}', space=sflag, size = 0x4, scoped, tag = 'scoped memory for tpu_custom_call.1']
    #allocation5 [shape = 'u8[16384]{0}', space=vmem, size = 0x4000, scoped, tag = 'input window, operand 1, single buffered']
    #allocation6 [shape = 's32[1]{0}', space=sflag, size = 0x4, scoped, tag = 'scoped memory for tpu_custom_call.1']
    #allocation7 [shape = 'u8[32768]{0}', space=vmem, size = 0x8000, scoped, tag = 'input window, operand 3, single buffered']
    #allocation8 [shape = 'u8[32768]{0}', space=vmem, size = 0x8000, scoped, tag = 'input window, operand 5, single buffered']
    #allocation9 [shape = 's32[1]{0}', space=sflag, size = 0x4, scoped, tag = 'scoped memory for tpu_custom_call.1']
    #allocation10 [shape = 'u8[4096]{0}', space=vmem, size = 0x1000, scoped, tag = 'output window, operand 0, single buffered']
    %12 = vsyncpa [#allocation3], 0
    %13 = vsyncpa [#allocation6], 0
    %14 = vsyncpa [#allocation9], 0
    %15 = vsyncpa [#allocation4], 0
    // Predicated region
    $region2: #{tpu_custom_call.1} parent=1 // pred_check
      _
    $region3: #{tpu_custom_call.1} parent=1 // pred_check_branch
      %17 = sbr.rel (0) target = $region5
    $region4: #{tpu_custom_call.1} parent=1 // pred_region
      %19 = vsyncadd [#allocation3], 0
      %s20 = sshll.u32 %s0, 4
      %s21 = int_to_ptr.hbm [resolvable:$true] %s20
      %s22 = sshll.u32 [#allocation2], 4
      %s23 = int_to_ptr.vmem [resolvable:$true] %s22
      %28 = dma.hbm_to_vmem [thread:$0]  %s21, 128, %s23, [#allocation3], 64, 64, 4
    $region5: #{tpu_custom_call.1} parent=1 // pred_fallthru
      _
    // Predicated region
    $region6: #{tpu_custom_call.1} parent=1 // pred_check
      _
    $region7: #{tpu_custom_call.1} parent=1 // pred_check_branch
      %30 = sbr.rel (0) target = $region9
    $region8: #{tpu_custom_call.1} parent=1 // pred_region
      %32 = vsyncadd [#allocation6], 0
      %s33 = sshll.u32 %s1, 4
      %s34 = int_to_ptr.hbm [resolvable:$true] %s33
      %s35 = sshll.u32 [#allocation5], 4
      %s36 = int_to_ptr.vmem [resolvable:$true] %s35
      %41 = dma.hbm_to_vmem [thread:$0]  %s34, 512, %s36, [#allocation6], 128, 128, 8
    $region9: #{tpu_custom_call.1} parent=1 // pred_fallthru
      _
    // Predicated region
    $region10: #{tpu_custom_call.1} parent=1 // pred_check
      _
    $region11: #{tpu_custom_call.1} parent=1 // pred_check_branch
      %43 = sbr.rel (0) target = $region13
    $region12: #{tpu_custom_call.1} parent=1 // pred_region
      _
    $region13: #{tpu_custom_call.1} parent=1 // pred_fallthru
      _
    // Predicated region
    $region14: #{tpu_custom_call.1} parent=1 // pred_check
      _
    $region15: #{tpu_custom_call.1} parent=1 // pred_check_branch
      %45 = sbr.rel (0) target = $region17
    $region16: #{tpu_custom_call.1} parent=1 // pred_region
      %47 = vsyncadd [#allocation6], 0
      %s48 = sshll.u32 %s3, 4
      %s49 = int_to_ptr.hbm [resolvable:$true] %s48
      %s50 = sshll.u32 [#allocation7], 4
      %s51 = int_to_ptr.vmem [resolvable:$true] %s50
      %56 = dma.hbm_to_vmem [thread:$0]  %s49, 1024, %s51, [#allocation6], 64, 64, 4
    $region17: #{tpu_custom_call.1} parent=1 // pred_fallthru
      _
    // Predicated region
    $region18: #{tpu_custom_call.1} parent=1 // pred_check
      _
    $region19: #{tpu_custom_call.1} parent=1 // pred_check_branch
      %58 = sbr.rel (0) target = $region21
    $region20: #{tpu_custom_call.1} parent=1 // pred_region
      _
    $region21: #{tpu_custom_call.1} parent=1 // pred_fallthru
      _
    // Predicated region
    $region22: #{tpu_custom_call.1} parent=1 // pred_check
      _
    $region23: #{tpu_custom_call.1} parent=1 // pred_check_branch
      %60 = sbr.rel (0) target = $region25
    $region24: #{tpu_custom_call.1} parent=1 // pred_region
      %62 = vsyncadd [#allocation9], 0
      %s63 = sshll.u32 %s5, 4
      %s64 = int_to_ptr.hbm [resolvable:$true] %s63
      %s65 = sshll.u32 [#allocation8], 4
      %s66 = int_to_ptr.vmem [resolvable:$true] %s65
      %71 = dma.hbm_to_vmem [thread:$0]  %s64, 1024, %s66, [#allocation9], 64, 64, 4
    $region25: #{tpu_custom_call.1} parent=1 // pred_fallthru
      _
    // Predicated region
    $region26: #{tpu_custom_call.1} parent=1 // pred_check
      _
    $region27: #{tpu_custom_call.1} parent=1 // pred_check_branch
      %73 = sbr.rel (0) target = $region29
    $region28: #{tpu_custom_call.1} parent=1 // pred_region
      _
    $region29: #{tpu_custom_call.1} parent=1 // pred_fallthru
      _
    // Predicated region
    $region30: #{tpu_custom_call.1} parent=1 // pred_check
      _
    $region31: #{tpu_custom_call.1} parent=1 // pred_check_branch
      %75 = sbr.rel (0) target = $region33
    $region32: #{tpu_custom_call.1} parent=1 // pred_region
      %77 = dma.done [#allocation3], 128
    $region33: #{tpu_custom_call.1} parent=1 // pred_fallthru
      _
    // Predicated region
    $region34: #{tpu_custom_call.1} parent=1 // pred_check
      _
    $region35: #{tpu_custom_call.1} parent=1 // pred_check_branch
      %79 = sbr.rel (0) target = $region37
    $region36: #{tpu_custom_call.1} parent=1 // pred_region
      %81 = dma.done [#allocation6], 512
    $region37: #{tpu_custom_call.1} parent=1 // pred_fallthru
      _
    // Predicated region
    $region38: #{tpu_custom_call.1} parent=1 // pred_check
      _
    $region39: #{tpu_custom_call.1} parent=1 // pred_check_branch
      %83 = sbr.rel (0) target = $region41
    $region40: #{tpu_custom_call.1} parent=1 // pred_region
      %85 = dma.done [#allocation6], 1024
    $region41: #{tpu_custom_call.1} parent=1 // pred_fallthru
      _
    // Predicated region
    $region42: #{tpu_custom_call.1} parent=1 // pred_check
      _
    $region43: #{tpu_custom_call.1} parent=1 // pred_check_branch
      %87 = sbr.rel (0) target = $region45
    $region44: #{tpu_custom_call.1} parent=1 // pred_region
      %89 = dma.done [#allocation9], 1024
    $region45: #{tpu_custom_call.1} parent=1 // pred_fallthru
      _
    %v90 = vld [vmem:[#allocation2] sm:$0xf]
    %v91 = vld [vmem:[#allocation2 + $0x4] sm:$0xf]
    %v92 = vunpack.c.l.bf16 %v90
    %v93 = vunpack.c.l.bf16 %v91
    %v94 = vld [vmem:[#allocation5] sm:$0xff]
    %v95 = vld [vmem:[#allocation5 + $0x8] sm:$0xff]
    %v96 = vld [vmem:[#allocation5 + $0x10] sm:$0xff]
    %v97 = vld [vmem:[#allocation5 + $0x18] sm:$0xff]
    %v98 = vld [vmem:[%s2] sm:$0x1]
    %v100 = vperm.slane %v98, 0
    %vm102 = vcmask 261120
    %v104 = vsel %vm102, %v92, 0
    %v107 = vsel %vm102, %v93, 0
    %109 = vmatpush.msra.mxu0 0.0
    %110 = vmatpush.msra.mxu0 0.0
    %111 = vmatpush.msra.mxu0 0.0
    %112 = vmatpush.msra.mxu0 0.0
    %113 = vmatpush.msra.mxu0 0.0
    %114 = vmatpush.msra.mxu0 0.0
    %115 = vmatpush.msra.mxu0 0.0
    %116 = vmatpush.msra.mxu0 0.0
    %117 = vmatpush.msra.mxu0 0.0
    %118 = vmatpush.msra.mxu0 0.0
    %119 = vmatpush.msra.mxu0 0.0
    %120 = vmatpush.msra.mxu0 0.0
    %121 = vmatpush.msra.mxu0 %v97
    %122 = vmatpush.msra.mxu0 %v96
    %123 = vmatpush.msra.mxu0 %v95
    %124 = vmatpush.msra.mxu0 %v94
    %125 = vmatmul.f32.gmra.mxu0 %v104
    %v126 = vpop.f32.mrf.mxu0
    %v127 = vadd.f32 %v100, %v126
    %128 = vmatmul.f32.gmra.mxu0 %v107
    %v129 = vpop.f32.mrf.mxu0
    %v130 = vadd.f32 %v100, %v129
    %131 = vdwg.mxu0
    %v132 = vmax.f32 %v127, 0.0
    %v133 = vmax.f32 %v130, 0.0
    %v134 = vpack.c.bf16 %v133, %v132
    %v135 = vld [vmem:[#allocation7] sm:$0xf]
    %v136 = vld [vmem:[#allocation7 + $0x4] sm:$0xf]
    %v137 = vld [vmem:[#allocation7 + $0x8] sm:$0xf]
    %v138 = vld [vmem:[#allocation7 + $0xc] sm:$0xf]
    %v139 = vld [vmem:[#allocation7 + $0x10] sm:$0xf]
    %v140 = vld [vmem:[#allocation7 + $0x14] sm:$0xf]
    %v141 = vld [vmem:[#allocation7 + $0x18] sm:$0xf]
    %v142 = vld [vmem:[#allocation7 + $0x1c] sm:$0xf]
    %v143 = vld [vmem:[#allocation7 + $0x20] sm:$0xf]
    %v144 = vld [vmem:[#allocation7 + $0x24] sm:$0xf]
    %v145 = vld [vmem:[#allocation7 + $0x28] sm:$0xf]
    %v146 = vld [vmem:[#allocation7 + $0x2c] sm:$0xf]
    %v147 = vld [vmem:[#allocation7 + $0x30] sm:$0xf]
    %v148 = vld [vmem:[#allocation7 + $0x34] sm:$0xf]
    %v149 = vld [vmem:[#allocation7 + $0x38] sm:$0xf]
    %v150 = vld [vmem:[#allocation7 + $0x3c] sm:$0xf]
    %v151 = vld [vmem:[%s4] sm:$0x1]
    %v153 = vperm.slane %v151, 0
    %v171 = vunpack.c.l.b16 %v135
    %v172 = vunpack.c.l.b16 %v136
    %v173 = vunpack.c.l.b16 %v137
    %v174 = vunpack.c.l.b16 %v138
    %v175 = vunpack.c.l.b16 %v139
    %v176 = vunpack.c.l.b16 %v140
    %v177 = vunpack.c.l.b16 %v141
    %v178 = vunpack.c.l.b16 %v142
    %v179 = vunpack.c.l.b16 %v143
    %v180 = vunpack.c.l.b16 %v144
    %v181 = vunpack.c.l.b16 %v145
    %v182 = vunpack.c.l.b16 %v146
    %v183 = vunpack.c.l.b16 %v147
    %v184 = vunpack.c.l.b16 %v148
    %v185 = vunpack.c.l.b16 %v149
    %v186 = vunpack.c.l.b16 %v150
    %v187 = vpack.c.b16 %v172, %v171
    %v188 = vpack.c.b16 %v174, %v173
    %v189 = vpack.c.b16 %v176, %v175
    %v190 = vpack.c.b16 %v178, %v177
    %v191 = vpack.c.b16 %v180, %v179
    %v192 = vpack.c.b16 %v182, %v181
    %v193 = vpack.c.b16 %v184, %v183
    %v194 = vpack.c.b16 %v186, %v185
    %203 = vmatpush.bf16.msra.mxu0 %v194
    %204 = vmatpush.bf16.msra.mxu0 %v193
    %205 = vmatpush.bf16.msra.mxu0 %v192
    %206 = vmatpush.bf16.msra.mxu0 %v191
    %207 = vmatpush.bf16.msra.mxu0 %v190
    %208 = vmatpush.bf16.msra.mxu0 %v189
    %209 = vmatpush.bf16.msra.mxu0 %v188
    %210 = vmatpush.bf16.msra.mxu0 %v187
    %211 = vmatmul.bf16.gmra.mxu0 %v134
    %v212 = vpop.f32.mrf.mxu0
    %v213 = vadd.f32 %v153, %v212
    %v214 = vpop.f32.mrf.mxu0
    %v215 = vadd.f32 %v153, %v214
    %216 = vdwg.mxu0
    %v217 = vmax.f32 %v213, 0.0
    %v218 = vmax.f32 %v215, 0.0
    %v219 = vpack.c.bf16 %v218, %v217
    %v220 = vld [vmem:[#allocation8] sm:$0xf]
    %v221 = vld [vmem:[#allocation8 + $0x4] sm:$0xf]
    %v222 = vld [vmem:[#allocation8 + $0x8] sm:$0xf]
    %v223 = vld [vmem:[#allocation8 + $0xc] sm:$0xf]
    %v224 = vld [vmem:[#allocation8 + $0x10] sm:$0xf]
    %v225 = vld [vmem:[#allocation8 + $0x14] sm:$0xf]
    %v226 = vld [vmem:[#allocation8 + $0x18] sm:$0xf]
    %v227 = vld [vmem:[#allocation8 + $0x1c] sm:$0xf]
    %v228 = vld [vmem:[#allocation8 + $0x20] sm:$0xf]
    %v229 = vld [vmem:[#allocation8 + $0x24] sm:$0xf]
    %v230 = vld [vmem:[#allocation8 + $0x28] sm:$0xf]
    %v231 = vld [vmem:[#allocation8 + $0x2c] sm:$0xf]
    %v232 = vld [vmem:[#allocation8 + $0x30] sm:$0xf]
    %v233 = vld [vmem:[#allocation8 + $0x34] sm:$0xf]
    %v234 = vld [vmem:[#allocation8 + $0x38] sm:$0xf]
    %v235 = vld [vmem:[#allocation8 + $0x3c] sm:$0xf]
    %v236 = vld [vmem:[%s6] sm:$0x1]
    %v238 = vperm.slane %v236, 0
    %v256 = vunpack.c.l.b16 %v220
    %v257 = vunpack.c.l.b16 %v221
    %v258 = vunpack.c.l.b16 %v222
    %v259 = vunpack.c.l.b16 %v223
    %v260 = vunpack.c.l.b16 %v224
    %v261 = vunpack.c.l.b16 %v225
    %v262 = vunpack.c.l.b16 %v226
    %v263 = vunpack.c.l.b16 %v227
    %v264 = vunpack.c.l.b16 %v228
    %v265 = vunpack.c.l.b16 %v229
    %v266 = vunpack.c.l.b16 %v230
    %v267 = vunpack.c.l.b16 %v231
    %v268 = vunpack.c.l.b16 %v232
    %v269 = vunpack.c.l.b16 %v233
    %v270 = vunpack.c.l.b16 %v234
    %v271 = vunpack.c.l.b16 %v235
    %v272 = vpack.c.b16 %v257, %v256
    %v273 = vpack.c.b16 %v259, %v258
    %v274 = vpack.c.b16 %v261, %v260
    %v275 = vpack.c.b16 %v263, %v262
    %v276 = vpack.c.b16 %v265, %v264
    %v277 = vpack.c.b16 %v267, %v266
    %v278 = vpack.c.b16 %v269, %v268
    %v279 = vpack.c.b16 %v271, %v270
    %288 = vmatpush.bf16.msra.mxu0 %v279
    %289 = vmatpush.bf16.msra.mxu0 %v278
    %290 = vmatpush.bf16.msra.mxu0 %v277
    %291 = vmatpush.bf16.msra.mxu0 %v276
    %292 = vmatpush.bf16.msra.mxu0 %v275
    %293 = vmatpush.bf16.msra.mxu0 %v274
    %294 = vmatpush.bf16.msra.mxu0 %v273
    %295 = vmatpush.bf16.msra.mxu0 %v272
    %296 = vmatmul.bf16.gmra.mxu0 %v219
    %v297 = vpop.f32.mrf.mxu0
    %v298 = vadd.f32 %v238, %v297
    %v299 = vpop.f32.mrf.mxu0
    %v300 = vadd.f32 %v238, %v299
    %301 = vdwg.mxu0
    %v302 = vmax.f32 %v298, 0.0
    %v303 = vmax.f32 %v300, 0.0
    %v304 = vmin.f32 %v302, 10.0
    %v305 = vmin.f32 %v303, 10.0
    %v306 = vpack.c.bf16 %v304, %v304
    %v307 = vpack.c.bf16 %v305, %v305
    %308 = vst [vmem:[#allocation10] sm:$0xf] %v306
    %309 = vst [vmem:[#allocation10 + $0x4] sm:$0xf] %v307
    // Predicated region
    $region46: #{tpu_custom_call.1} parent=1 // pred_check
      _
    $region47: #{tpu_custom_call.1} parent=1 // pred_check_branch
      %311 = sbr.rel (0) target = $region49
    $region48: #{tpu_custom_call.1} parent=1 // pred_region
      %313 = vsyncadd [#allocation4], 0
      %s314 = sshll.u32 [#allocation10], 4
      %s315 = int_to_ptr.vmem [resolvable:$true] %s314
      %s316 = sshll.u32 %s7, 4
      %s317 = int_to_ptr.hbm [resolvable:$true] %s316
      %322 = dma.vmem_to_hbm [thread:$0]  %s315, 128, %s317, [#allocation4], 64, 64, 4
    $region49: #{tpu_custom_call.1} parent=1 // pred_fallthru
      _
    // Predicated region
    $region50: #{tpu_custom_call.1} parent=1 // pred_check
      _
    $region51: #{tpu_custom_call.1} parent=1 // pred_check_branch
      %324 = sbr.rel (0) target = $region53
    $region52: #{tpu_custom_call.1} parent=1 // pred_region
      %326 = dma.done [#allocation4], 128
    $region53: #{tpu_custom_call.1} parent=1 // pred_fallthru
      _
    %327 = vsyncpa [#allocation3], 1
    %328 = vsyncpa [#allocation6], 1
    %329 = vsyncpa [#allocation9], 1
    %330 = vsyncpa [#allocation4], 1

</llo_original>
